<compile_context>
chip_gen: v5e
topology: v5e:2x2
jax: 0.10.0
libtpu: 0.0.40
codegen_flags: <defaults>
</compile_context>

<pallas_src>
import functools

import jax
import jax.numpy as jnp
from jax import lax
from jax.experimental import pallas as pl
from jax.experimental.pallas import tpu as pltpu


def _l1_joint_loss_kernel(pred_ref, gt_ref, vis_ref, out_ref, *,
                          coord_dim, block_rows, total_rows, need_mask):
    """Blocks: pred/gt (tb, Lp), vis (tb, Lv) with Lp = Lv * coord_dim.
    Writes this block's partial sum (broadcast over a (1, 1, 128) out block)."""
    pred = pred_ref[...].astype(jnp.float32)      # (tb, Lp)
    gt = gt_ref[...].astype(jnp.float32)          # (tb, Lp)
    vis = vis_ref[...].astype(jnp.float32)        # (tb, Lv)

    diff = jnp.abs(pred - gt)                     # (tb, Lp)

    lp = diff.shape[-1]
    lv = vis.shape[-1]

    # Constant 0/1 "sum every coord_dim adjacent lanes" matrix, contracted on
    # the MXU: E[r, c] = 1 iff lane r belongs to joint slot c.  (No integer
    # division, no lane-splitting reshape.)
    r_idx = lax.broadcasted_iota(jnp.int32, (lp, lv), 0)
    c_idx = lax.broadcasted_iota(jnp.int32, (lp, lv), 1)
    lo = c_idx * coord_dim
    expand = ((r_idx >= lo) & (r_idx < lo + coord_dim)).astype(jnp.float32)

    per_joint = jnp.dot(diff, expand,
                        precision=lax.Precision.HIGHEST,
                        preferred_element_type=jnp.float32)   # (tb, Lv)
    contrib = per_joint * vis                                  # (tb, Lv)

    if need_mask:  # only emitted when the last grid block is partial
        row = (pl.program_id(0) * block_rows
               + lax.broadcasted_iota(jnp.int32, contrib.shape, 0))
        contrib = jnp.where(row < total_rows, contrib, 0.0)

    out_ref[...] = jnp.full(out_ref.shape, jnp.sum(contrib), dtype=out_ref.dtype)


def _pick_fold(n, j, d, max_fold=16, max_lanes=512):
    """Largest divisor of n (<=16) s.t. fold*j*d stays lane-friendly, preferring
    folds that keep at least 8 folded rows (healthy sublane/matmul M dim)."""
    cands = [c for c in range(1, min(max_fold, n) + 1)
             if n % c == 0 and c * j * d <= max_lanes]
    if not cands:
        return 1
    good = [c for c in cands if n // c >= 8]
    return max(good) if good else max(cands)


def l1_joint_regression_loss(preds, batch_joints, batch_joints_vis):
    """preds: (N, J, Dp); batch_joints: (N, J, D) with D in {2, 3};
    batch_joints_vis: (N, J).  Returns scalar f32 loss."""
    N, J, Dp = preds.shape
    Ng, Jg, D = batch_joints.shape
    assert (N, J) == (Ng, Jg), "batch/joint size mismatch"
    assert batch_joints_vis.shape == (N, J), "joints_vis must be (N, J)"
    assert D in (2, 3), "gt joints must be (N, J, 2) or (N, J, 3)"
    assert Dp >= D

    if Dp != D:
        # TODO(synk): rare 2-D-gt / wider-preds path; this slice materializes one
        # extra copy of preds (the common Dp == D path has zero wrapper passes).
        preds = preds[:, :, :D]

    # Fold a few batch rows into the lane axis (free row-major reshapes).
    fold = _pick_fold(N, J, D)
    R = N // fold
    Lp = fold * J * D
    Lv = fold * J

    pred2 = preds.reshape(R, Lp)
    gt2 = batch_joints.reshape(R, Lp)
    vis2 = batch_joints_vis.reshape(R, Lv)

    if R < 8:
        # Tiny batch: zero-pad rows to 8 (zero rows contribute nothing) so the
        # sublane / matmul M dimension stays healthy.
        pad = 8 - R
        pred2 = jnp.pad(pred2, ((0, pad), (0, 0)))
        gt2 = jnp.pad(gt2, ((0, pad), (0, 0)))
        vis2 = jnp.pad(vis2, ((0, pad), (0, 0)))
        R = 8

    # Pick the largest row tile that keeps the double-buffered working set
    # comfortably inside VMEM on every generation (v5e/v6e/v7x).
    lane = 128
    lp_pad = ((Lp + lane - 1) // lane) * lane
    lv_pad = ((Lv + lane - 1) // lane) * lane
    row_bytes = 4 * (2 * lp_pad + lv_pad)          # f32 upper bound in VMEM
    budget = 6 * 1024 * 1024                        # single-buffered per step
    cap = max(8, min(1024, budget // row_bytes))
    tb = R if R <= cap else (cap // 8) * 8
    grid = pl.cdiv(R, tb)
    need_mask = (R % tb) != 0

    kernel = functools.partial(
        _l1_joint_loss_kernel,
        coord_dim=D, block_rows=tb, total_rows=R, need_mask=need_mask)

    partials = pl.pallas_call(
        kernel,
        out_shape=jax.ShapeDtypeStruct((grid, 1, 128), jnp.float32),
        grid_spec=pltpu.PrefetchScalarGridSpec(
            num_scalar_prefetch=0,
            grid=(grid,),
            in_specs=[
                pl.BlockSpec((tb, Lp), lambda b: (b, 0)),
                pl.BlockSpec((tb, Lp), lambda b: (b, 0)),
                pl.BlockSpec((tb, Lv), lambda b: (b, 0)),
            ],
            out_specs=pl.BlockSpec((1, 1, 128), lambda b: (b, 0, 0)),
        ),
        compiler_params=pltpu.CompilerParams(
            dimension_semantics=("parallel",),      # per-block partials -> v7x 2-TC split
            vmem_limit_bytes=32 * 1024 * 1024,
        ),
    )(pred2, gt2, vis2)

    # Tiny final reduction over per-block partial sums stays in XLA.
    return jnp.sum(partials[:, 0, 0])


if __name__ == "__main__":
    key = jax.random.PRNGKey(0)

    def reference(preds, gt, vis):
        d = gt.shape[-1]
        return jnp.sum(jnp.abs(preds[..., :d].astype(jnp.float32)
                               - gt.astype(jnp.float32))
                       * vis.astype(jnp.float32)[:, :, None])

    # Case 1: 3-D joints; batch folded 16x into the lane axis (aligned matmul).
    k1, k2, k3, key = jax.random.split(key, 4)
    N, J, D = 256, 8, 3
    preds = jax.random.normal(k1, (N, J, D), dtype=jnp.float32)
    gt = jax.random.normal(k2, (N, J, D), dtype=jnp.float32)
    vis = (jax.random.uniform(k3, (N, J)) > 0.3).astype(jnp.float32)
    out = jax.block_until_ready(l1_joint_regression_loss(preds, gt, vis))
    ref = reference(preds, gt, vis)
    assert jnp.allclose(out, ref, rtol=1e-3, atol=1e-3), (out, ref)

    # Case 2: 2-D joints with 3-D predictions (slice path), unaligned lanes.
    k1, k2, k3, key = jax.random.split(key, 4)
    N, J, D = 48, 8, 2
    preds = jax.random.normal(k1, (N, J, 3), dtype=jnp.float32)
    gt = jax.random.normal(k2, (N, J, D), dtype=jnp.float32)
    vis = (jax.random.uniform(k3, (N, J)) > 0.5).astype(jnp.float32)
    out = jax.block_until_ready(l1_joint_regression_loss(preds, gt, vis))
    ref = reference(preds, gt, vis)
    assert jnp.allclose(out, ref, rtol=1e-3, atol=1e-3), (out, ref)

    # Case 3: tiny batch (exercises the pad-rows-to-8 path).
    k1, k2, k3, key = jax.random.split(key, 4)
    N, J, D = 2, 8, 3
    preds = jax.random.normal(k1, (N, J, D), dtype=jnp.float32)
    gt = jax.random.normal(k2, (N, J, D), dtype=jnp.float32)
    vis = (jax.random.uniform(k3, (N, J)) > 0.3).astype(jnp.float32)
    out = jax.block_until_ready(l1_joint_regression_loss(preds, gt, vis))
    ref = reference(preds, gt, vis)
    assert jnp.allclose(out, ref, rtol=1e-3, atol=1e-3), (out, ref)

    print("KERNEL_OK")
</pallas_src>

<mosaic_0001>
module attributes {stable_mosaic.version = 11 : i64} {
  func.func @_l1_joint_loss_kernel(%arg0: i32, %arg1: memref<16x384xf32, #tpu.memory_space<vmem>>, %arg2: memref<16x384xf32, #tpu.memory_space<vmem>>, %arg3: memref<16x128xf32, #tpu.memory_space<vmem>>, %arg4: memref<1x1x128xf32, #tpu.memory_space<vmem>>) attributes {dimension_semantics = [#tpu.dimension_semantics<parallel>], iteration_bounds = array<i64: 1>, scalar_prefetch = 0 : i64, scratch_operands = 0 : i64, tpu.core_type = #tpu.core_type<tc>, window_params = [{transform_indices = @transform_0, window_bounds = array<i64: 16, 384>}, {transform_indices = @transform_1, window_bounds = array<i64: 16, 384>}, {transform_indices = @transform_2, window_bounds = array<i64: 16, 128>}, {transform_indices = @transform_3, window_bounds = array<i64: 1, 1, 128>}]} {
    %c0 = arith.constant 0 : index
    %c0_0 = arith.constant 0 : index
    %0 = vector.load %arg1[%c0, %c0_0] : memref<16x384xf32, #tpu.memory_space<vmem>>, vector<16x384xf32>
    %c0_1 = arith.constant 0 : index
    %c0_2 = arith.constant 0 : index
    %1 = vector.load %arg2[%c0_1, %c0_2] : memref<16x384xf32, #tpu.memory_space<vmem>>, vector<16x384xf32>
    %c0_3 = arith.constant 0 : index
    %c0_4 = arith.constant 0 : index
    %2 = vector.load %arg3[%c0_3, %c0_4] : memref<16x128xf32, #tpu.memory_space<vmem>>, vector<16x128xf32>
    %3 = arith.subf %0, %1 : vector<16x384xf32>
    %4 = math.absf %3 : vector<16x384xf32>
    %5 = tpu.iota {dimensions = array<i32: 0>} : vector<384x128xi32>
    %6 = tpu.iota {dimensions = array<i32: 1>} : vector<384x128xi32>
    %c3_i32 = arith.constant 3 : i32
    %7 = vector.broadcast %c3_i32 : i32 to vector<384x128xi32>
    %8 = arith.muli %6, %7 : vector<384x128xi32>
    %9 = arith.cmpi sge, %5, %8 : vector<384x128xi32>
    %c3_i32_5 = arith.constant 3 : i32
    %10 = vector.broadcast %c3_i32_5 : i32 to vector<384x128xi32>
    %11 = arith.addi %8, %10 : vector<384x128xi32>
    %12 = arith.cmpi slt, %5, %11 : vector<384x128xi32>
    %13 = arith.andi %9, %12 : vector<384x128xi1>
    %14 = arith.extui %13 : vector<384x128xi1> to vector<384x128xi32>
    %15 = arith.sitofp %14 : vector<384x128xi32> to vector<384x128xf32>
    %cst = arith.constant dense<0.000000e+00> : vector<16x128xf32>
    %16 = tpu.matmul %4, %15, %cst {dimension_numbers = #tpu.dot_dimension_numbers<[1], [0], [0], [1], [0, 0, 1, 1], [], []>, precision = #tpu.contract_precision<fp32>} : vector<16x384xf32>, vector<384x128xf32>, vector<16x128xf32> -> vector<16x128xf32>
    %17 = arith.mulf %16, %2 : vector<16x128xf32>
    %18 = vector.shape_cast %17 : vector<16x128xf32> to vector<1x16x128xf32>
    %cst_6 = arith.constant dense<0.000000e+00> : vector<1xf32>
    %19 = vector.multi_reduction <add>, %18, %cst_6 [1, 2] : vector<1x16x128xf32> to vector<1xf32>
    %20 = vector.shape_cast %19 : vector<1xf32> to vector<1x1x1xf32>
    %21 = vector.extract %20[0, 0, 0] : f32 from vector<1x1x1xf32>
    %22 = vector.broadcast %21 : f32 to vector<1x1x128xf32>
    %c0_7 = arith.constant 0 : index
    %c0_8 = arith.constant 0 : index
    %c0_9 = arith.constant 0 : index
    %23 = vector.load %arg4[%c0_7, %c0_8, %c0_9] : memref<1x1x128xf32, #tpu.memory_space<vmem>>, vector<1x1x128xf32>
    tpu.vector_store %arg4[%c0_7, %c0_8, %c0_9], %22 {strides = array<i32>} : memref<1x1x128xf32, #tpu.memory_space<vmem>>, vector<1x1x128xf32>,
    return
  }
  func.func @transform_0(%arg0: i32) -> (i32, i32) {
    %c0_i32 = arith.constant 0 : i32
    %c0_i32_0 = arith.constant 0 : i32
    return %arg0, %c0_i32 : i32, i32
  }
  func.func @transform_1(%arg0: i32) -> (i32, i32) {
    %c0_i32 = arith.constant 0 : i32
    %c0_i32_0 = arith.constant 0 : i32
    return %arg0, %c0_i32 : i32, i32
  }
  func.func @transform_2(%arg0: i32) -> (i32, i32) {
    %c0_i32 = arith.constant 0 : i32
    %c0_i32_0 = arith.constant 0 : i32
    return %arg0, %c0_i32 : i32, i32
  }
  func.func @transform_3(%arg0: i32) -> (i32, i32, i32) {
    %c0_i32 = arith.constant 0 : i32
    %c0_i32_0 = arith.constant 0 : i32
    %c0_i32_1 = arith.constant 0 : i32
    return %arg0, %c0_i32, %c0_i32_0 : i32, i32, i32
  }
}

</mosaic_0001>

<llo_original>
// kernel: tpu_custom_call.1
$region0: #{tpu_custom_call.1}
  #allocation0 [shape = 'u32[]', space=smem, size = 0x4, offset = 0x4, fixed_abs, tag = 'smem constant byte address 0x4 - core index']
  #allocation1 [shape = 'u32[72,128]{1,0:T(1,128)}', space=vmem, size = 0x9000, scoped, tag = 'internal scratch']
  %s0 = inlined_call_operand.hbm [shape: f32[16,384], index: 0, kind: input, shape index: {}]
  %s1 = inlined_call_operand.hbm [shape: f32[16,384], index: 1, kind: input, shape index: {}]
  %s2 = inlined_call_operand.hbm [shape: f32[16,128], index: 2, kind: input, shape index: {}]
  %s3 = inlined_call_operand.hbm [shape: f32[1,1,128], index: 3, kind: output, shape index: {}]
  %s4 = sld [smem:[#allocation0]]
  $region34: #{tpu_custom_call.1} parent=0
    _
  %s6 = ssub.s32 1, %s4
  %s7 = scalar_select 0, %s6, %s4
  $region1: #{tpu_custom_call.1} parent=0
    #allocation2 [shape = 'u8[24576]{0}', space=vmem, size = 0x6000, scoped, tag = 'input window, operand 0, single buffered']
    #allocation3 [shape = 's32[1]{0}', space=sflag, size = 0x4, scoped, tag = 'scoped memory for tpu_custom_call.1']
    #allocation4 [shape = 's32[1]{0}', space=sflag, size = 0x4, scoped, tag = 'scoped memory for tpu_custom_call.1']
    #allocation5 [shape = 'u8[24576]{0}', space=vmem, size = 0x6000, scoped, tag = 'input window, operand 1, single buffered']
    #allocation6 [shape = 's32[1]{0}', space=sflag, size = 0x4, scoped, tag = 'scoped memory for tpu_custom_call.1']
    #allocation7 [shape = 'u8[8192]{0}', space=vmem, size = 0x2000, scoped, tag = 'input window, operand 2, single buffered']
    #allocation8 [shape = 'u8[512]{0}', space=vmem, size = 0x400, scoped, tag = 'output window, operand 0, single buffered']
    %8 = vsyncpa [#allocation3], 0
    %9 = vsyncpa [#allocation6], 0
    %10 = vsyncpa [#allocation4], 0
    // Predicated region
    $region2: #{tpu_custom_call.1} parent=1 // pred_check
      _
    $region3: #{tpu_custom_call.1} parent=1 // pred_check_branch
      %12 = sbr.rel (0) target = $region5
    $region4: #{tpu_custom_call.1} parent=1 // pred_region
      %14 = vsyncadd [#allocation3], 0
      %s15 = sshll.u32 %s0, 4
      %s16 = int_to_ptr.hbm [resolvable:$true] %s15
      %s17 = sshll.u32 [#allocation2], 4
      %s18 = int_to_ptr.vmem [resolvable:$true] %s17
      %23 = dma.hbm_to_vmem [thread:$0]  %s16, 768, %s18, [#allocation3], 384, 384, 24
    $region5: #{tpu_custom_call.1} parent=1 // pred_fallthru
      _
    // Predicated region
    $region6: #{tpu_custom_call.1} parent=1 // pred_check
      _
    $region7: #{tpu_custom_call.1} parent=1 // pred_check_branch
      %25 = sbr.rel (0) target = $region9
    $region8: #{tpu_custom_call.1} parent=1 // pred_region
      %27 = vsyncadd [#allocation6], 0
      %s28 = sshll.u32 %s1, 4
      %s29 = int_to_ptr.hbm [resolvable:$true] %s28
      %s30 = sshll.u32 [#allocation5], 4
      %s31 = int_to_ptr.vmem [resolvable:$true] %s30
      %36 = dma.hbm_to_vmem [thread:$0]  %s29, 768, %s31, [#allocation6], 384, 384, 24
    $region9: #{tpu_custom_call.1} parent=1 // pred_fallthru
      _
    // Predicated region
    $region10: #{tpu_custom_call.1} parent=1 // pred_check
      _
    $region11: #{tpu_custom_call.1} parent=1 // pred_check_branch
      %38 = sbr.rel (0) target = $region13
    $region12: #{tpu_custom_call.1} parent=1 // pred_region
      %40 = vsyncadd [#allocation6], 0
      %s41 = sshll.u32 %s2, 4
      %s42 = int_to_ptr.hbm [resolvable:$true] %s41
      %s43 = sshll.u32 [#allocation7], 4
      %s44 = int_to_ptr.vmem [resolvable:$true] %s43
      %49 = dma.hbm_to_vmem [thread:$0]  %s42, 256, %s44, [#allocation6], 128, 128, 8
    $region13: #{tpu_custom_call.1} parent=1 // pred_fallthru
      _
    // Predicated region
    $region14: #{tpu_custom_call.1} parent=1 // pred_check
      _
    $region15: #{tpu_custom_call.1} parent=1 // pred_check_branch
      %51 = sbr.rel (0) target = $region17
    $region16: #{tpu_custom_call.1} parent=1 // pred_region
      %53 = dma.done [#allocation3], 768
    $region17: #{tpu_custom_call.1} parent=1 // pred_fallthru
      _
    // Predicated region
    $region18: #{tpu_custom_call.1} parent=1 // pred_check
      _
    $region19: #{tpu_custom_call.1} parent=1 // pred_check_branch
      %55 = sbr.rel (0) target = $region21
    $region20: #{tpu_custom_call.1} parent=1 // pred_region
      %57 = dma.done [#allocation6], 768
    $region21: #{tpu_custom_call.1} parent=1 // pred_fallthru
      _
    // Predicated region
    $region22: #{tpu_custom_call.1} parent=1 // pred_check
      _
    $region23: #{tpu_custom_call.1} parent=1 // pred_check_branch
      %59 = sbr.rel (0) target = $region25
    $region24: #{tpu_custom_call.1} parent=1 // pred_region
      %61 = dma.done [#allocation6], 256
    $region25: #{tpu_custom_call.1} parent=1 // pred_fallthru
      _
    %v62 = vld [vmem:[#allocation2] sm:$0xff]
    %v63 = vld [vmem:[#allocation2 + $0x8] sm:$0xff]
    %v64 = vld [vmem:[#allocation2 + $0x10] sm:$0xff]
    %v65 = vld [vmem:[#allocation2 + $0x18] sm:$0xff]
    %v66 = vld [vmem:[#allocation2 + $0x20] sm:$0xff]
    %v67 = vld [vmem:[#allocation2 + $0x28] sm:$0xff]
    %v68 = vld [vmem:[#allocation5] sm:$0xff]
    %v69 = vld [vmem:[#allocation5 + $0x8] sm:$0xff]
    %v70 = vld [vmem:[#allocation5 + $0x10] sm:$0xff]
    %v71 = vld [vmem:[#allocation5 + $0x18] sm:$0xff]
    %v72 = vld [vmem:[#allocation5 + $0x20] sm:$0xff]
    %v73 = vld [vmem:[#allocation5 + $0x28] sm:$0xff]
    %v74 = vld [vmem:[#allocation7] sm:$0xff]
    %v75 = vld [vmem:[#allocation7 + $0x8] sm:$0xff]
    %v76 = vsub.f32 %v62, %v68
    %v77 = vsub.f32 %v63, %v69
    %v78 = vsub.f32 %v64, %v70
    %v79 = vsub.f32 %v65, %v71
    %v80 = vsub.f32 %v66, %v72
    %v81 = vsub.f32 %v67, %v73
    %v82 = vand.u32 2147483647, %v76
    %v83 = vand.u32 2147483647, %v77
    %v84 = vand.u32 2147483647, %v78
    %v85 = vand.u32 2147483647, %v79
    %v86 = vand.u32 2147483647, %v80
    %v87 = vand.u32 2147483647, %v81
    %v88 = vlaneseq
    %v89 = vshrl.u32 %v88, 7
    %v90 = vadd.s32 %v89, 8
    %v91 = vadd.s32 %v89, 16
    %v92 = vadd.s32 %v89, 24
    %v93 = vadd.s32 %v89, 32
    %v94 = vadd.s32 %v89, 40
    %v95 = vadd.s32 %v89, 48
    %v96 = vadd.s32 %v89, 56
    %v97 = vadd.s32 %v89, 64
    %v98 = vadd.s32 %v89, 72
    %v99 = vadd.s32 %v89, 80
    %v100 = vadd.s32 %v89, 88
    %v101 = vadd.s32 %v89, 96
    %v102 = vadd.s32 %v89, 104
    %v103 = vadd.s32 %v89, 112
    %v104 = vadd.s32 %v89, 120
    %v105 = vadd.s32 %v89, 128
    %v106 = vadd.s32 %v89, 136
    %v107 = vadd.s32 %v89, 144
    %v108 = vadd.s32 %v89, 152
    %v109 = vadd.s32 %v89, 160
    %v110 = vadd.s32 %v89, 168
    %v111 = vadd.s32 %v89, 176
    %v112 = vadd.s32 %v89, 184
    %v113 = vadd.s32 %v89, 192
    %v114 = vadd.s32 %v89, 200
    %v115 = vadd.s32 %v89, 208
    %v116 = vadd.s32 %v89, 216
    %v117 = vadd.s32 %v89, 224
    %v118 = vadd.s32 %v89, 232
    %v119 = vadd.s32 %v89, 240
    %v120 = vadd.s32 %v89, 248
    %v121 = vadd.s32 %v89, 256
    %v122 = vadd.s32 %v89, 264
    %v123 = vadd.s32 %v89, 272
    %v124 = vadd.s32 %v89, 280
    %v125 = vadd.s32 %v89, 288
    %v126 = vadd.s32 %v89, 296
    %v127 = vadd.s32 %v89, 304
    %v128 = vadd.s32 %v89, 312
    %v129 = vadd.s32 %v89, 320
    %v130 = vadd.s32 %v89, 328
    %v131 = vadd.s32 %v89, 336
    %v132 = vadd.s32 %v89, 344
    %v133 = vadd.s32 %v89, 352
    %v134 = vadd.s32 %v89, 360
    %v135 = vadd.s32 %v89, 368
    %v136 = vadd.s32 %v89, 376
    %v137 = vlaneseq
    %v138 = vand.u32 %v137, 127
    %v139 = vmul.u32 %v138, 3
    %vm140 = vcmp.ge.s32.totalorder %v89, %v139
    %vm141 = vcmp.ge.s32.totalorder %v90, %v139
    %vm142 = vcmp.ge.s32.totalorder %v91, %v139
    %vm143 = vcmp.ge.s32.totalorder %v92, %v139
    %vm144 = vcmp.ge.s32.totalorder %v93, %v139
    %vm145 = vcmp.ge.s32.totalorder %v94, %v139
    %vm146 = vcmp.ge.s32.totalorder %v95, %v139
    %vm147 = vcmp.ge.s32.totalorder %v96, %v139
    %vm148 = vcmp.ge.s32.totalorder %v97, %v139
    %vm149 = vcmp.ge.s32.totalorder %v98, %v139
    %vm150 = vcmp.ge.s32.totalorder %v99, %v139
    %vm151 = vcmp.ge.s32.totalorder %v100, %v139
    %vm152 = vcmp.ge.s32.totalorder %v101, %v139
    %vm153 = vcmp.ge.s32.totalorder %v102, %v139
    %vm154 = vcmp.ge.s32.totalorder %v103, %v139
    %vm155 = vcmp.ge.s32.totalorder %v104, %v139
    %vm156 = vcmp.ge.s32.totalorder %v105, %v139
    %vm157 = vcmp.ge.s32.totalorder %v106, %v139
    %vm158 = vcmp.ge.s32.totalorder %v107, %v139
    %vm159 = vcmp.ge.s32.totalorder %v108, %v139
    %vm160 = vcmp.ge.s32.totalorder %v109, %v139
    %vm161 = vcmp.ge.s32.totalorder %v110, %v139
    %vm162 = vcmp.ge.s32.totalorder %v111, %v139
    %vm163 = vcmp.ge.s32.totalorder %v112, %v139
    %vm164 = vcmp.ge.s32.totalorder %v113, %v139
    %vm165 = vcmp.ge.s32.totalorder %v114, %v139
    %vm166 = vcmp.ge.s32.totalorder %v115, %v139
    %vm167 = vcmp.ge.s32.totalorder %v116, %v139
    %vm168 = vcmp.ge.s32.totalorder %v117, %v139
    %vm169 = vcmp.ge.s32.totalorder %v118, %v139
    %vm170 = vcmp.ge.s32.totalorder %v119, %v139
    %vm171 = vcmp.ge.s32.totalorder %v120, %v139
    %vm172 = vcmp.ge.s32.totalorder %v121, %v139
    %vm173 = vcmp.ge.s32.totalorder %v122, %v139
    %vm174 = vcmp.ge.s32.totalorder %v123, %v139
    %vm175 = vcmp.ge.s32.totalorder %v124, %v139
    %vm176 = vcmp.ge.s32.totalorder %v125, %v139
    %vm177 = vcmp.ge.s32.totalorder %v126, %v139
    %vm178 = vcmp.ge.s32.totalorder %v127, %v139
    %vm179 = vcmp.ge.s32.totalorder %v128, %v139
    %vm180 = vcmp.ge.s32.totalorder %v129, %v139
    %vm181 = vcmp.ge.s32.totalorder %v130, %v139
    %vm182 = vcmp.ge.s32.totalorder %v131, %v139
    %vm183 = vcmp.ge.s32.totalorder %v132, %v139
    %vm184 = vcmp.ge.s32.totalorder %v133, %v139
    %vm185 = vcmp.ge.s32.totalorder %v134, %v139
    %vm186 = vcmp.ge.s32.totalorder %v135, %v139
    %vm187 = vcmp.ge.s32.totalorder %v136, %v139
    %v188 = vadd.s32 %v139, 3
    %vm189 = vcmp.lt.s32.totalorder %v89, %v188
    %vm190 = vcmp.lt.s32.totalorder %v90, %v188
    %vm191 = vcmp.lt.s32.totalorder %v91, %v188
    %vm192 = vcmp.lt.s32.totalorder %v92, %v188
    %vm193 = vcmp.lt.s32.totalorder %v93, %v188
    %vm194 = vcmp.lt.s32.totalorder %v94, %v188
    %vm195 = vcmp.lt.s32.totalorder %v95, %v188
    %vm196 = vcmp.lt.s32.totalorder %v96, %v188
    %vm197 = vcmp.lt.s32.totalorder %v97, %v188
    %vm198 = vcmp.lt.s32.totalorder %v98, %v188
    %vm199 = vcmp.lt.s32.totalorder %v99, %v188
    %vm200 = vcmp.lt.s32.totalorder %v100, %v188
    %vm201 = vcmp.lt.s32.totalorder %v101, %v188
    %vm202 = vcmp.lt.s32.totalorder %v102, %v188
    %vm203 = vcmp.lt.s32.totalorder %v103, %v188
    %vm204 = vcmp.lt.s32.totalorder %v104, %v188
    %vm205 = vcmp.lt.s32.totalorder %v105, %v188
    %vm206 = vcmp.lt.s32.totalorder %v106, %v188
    %vm207 = vcmp.lt.s32.totalorder %v107, %v188
    %vm208 = vcmp.lt.s32.totalorder %v108, %v188
    %vm209 = vcmp.lt.s32.totalorder %v109, %v188
    %vm210 = vcmp.lt.s32.totalorder %v110, %v188
    %vm211 = vcmp.lt.s32.totalorder %v111, %v188
    %vm212 = vcmp.lt.s32.totalorder %v112, %v188
    %vm213 = vcmp.lt.s32.totalorder %v113, %v188
    %vm214 = vcmp.lt.s32.totalorder %v114, %v188
    %vm215 = vcmp.lt.s32.totalorder %v115, %v188
    %vm216 = vcmp.lt.s32.totalorder %v116, %v188
    %vm217 = vcmp.lt.s32.totalorder %v117, %v188
    %vm218 = vcmp.lt.s32.totalorder %v118, %v188
    %vm219 = vcmp.lt.s32.totalorder %v119, %v188
    %vm220 = vcmp.lt.s32.totalorder %v120, %v188
    %vm221 = vcmp.lt.s32.totalorder %v121, %v188
    %vm222 = vcmp.lt.s32.totalorder %v122, %v188
    %vm223 = vcmp.lt.s32.totalorder %v123, %v188
    %vm224 = vcmp.lt.s32.totalorder %v124, %v188
    %vm225 = vcmp.lt.s32.totalorder %v125, %v188
    %vm226 = vcmp.lt.s32.totalorder %v126, %v188
    %vm227 = vcmp.lt.s32.totalorder %v127, %v188
    %vm228 = vcmp.lt.s32.totalorder %v128, %v188
    %vm229 = vcmp.lt.s32.totalorder %v129, %v188
    %vm230 = vcmp.lt.s32.totalorder %v130, %v188
    %vm231 = vcmp.lt.s32.totalorder %v131, %v188
    %vm232 = vcmp.lt.s32.totalorder %v132, %v188
    %vm233 = vcmp.lt.s32.totalorder %v133, %v188
    %vm234 = vcmp.lt.s32.totalorder %v134, %v188
    %vm235 = vcmp.lt.s32.totalorder %v135, %v188
    %vm236 = vcmp.lt.s32.totalorder %v136, %v188
    %vm237 = vmand %vm140, %vm189
    %vm238 = vmand %vm141, %vm190
    %vm239 = vmand %vm142, %vm191
    %vm240 = vmand %vm143, %vm192
    %vm241 = vmand %vm144, %vm193
    %vm242 = vmand %vm145, %vm194
    %vm243 = vmand %vm146, %vm195
    %vm244 = vmand %vm147, %vm196
    %vm245 = vmand %vm148, %vm197
    %vm246 = vmand %vm149, %vm198
    %vm247 = vmand %vm150, %vm199
    %vm248 = vmand %vm151, %vm200
    %vm249 = vmand %vm152, %vm201
    %vm250 = vmand %vm153, %vm202
    %vm251 = vmand %vm154, %vm203
    %vm252 = vmand %vm155, %vm204
    %vm253 = vmand %vm156, %vm205
    %vm254 = vmand %vm157, %vm206
    %vm255 = vmand %vm158, %vm207
    %vm256 = vmand %vm159, %vm208
    %vm257 = vmand %vm160, %vm209
    %vm258 = vmand %vm161, %vm210
    %vm259 = vmand %vm162, %vm211
    %vm260 = vmand %vm163, %vm212
    %vm261 = vmand %vm164, %vm213
    %vm262 = vmand %vm165, %vm214
    %vm263 = vmand %vm166, %vm215
    %vm264 = vmand %vm167, %vm216
    %vm265 = vmand %vm168, %vm217
    %vm266 = vmand %vm169, %vm218
    %vm267 = vmand %vm170, %vm219
    %vm268 = vmand %vm171, %vm220
    %vm269 = vmand %vm172, %vm221
    %vm270 = vmand %vm173, %vm222
    %vm271 = vmand %vm174, %vm223
    %vm272 = vmand %vm175, %vm224
    %vm273 = vmand %vm176, %vm225
    %vm274 = vmand %vm177, %vm226
    %vm275 = vmand %vm178, %vm227
    %vm276 = vmand %vm179, %vm228
    %vm277 = vmand %vm180, %vm229
    %vm278 = vmand %vm181, %vm230
    %vm279 = vmand %vm182, %vm231
    %vm280 = vmand %vm183, %vm232
    %vm281 = vmand %vm184, %vm233
    %vm282 = vmand %vm185, %vm234
    %vm283 = vmand %vm186, %vm235
    %vm284 = vmand %vm187, %vm236
    %v285 = vsel %vm237, 1, 0
    %v286 = vsel %vm238, 1, 0
    %v287 = vsel %vm239, 1, 0
    %v288 = vsel %vm240, 1, 0
    %v289 = vsel %vm241, 1, 0
    %v290 = vsel %vm242, 1, 0
    %v291 = vsel %vm243, 1, 0
    %v292 = vsel %vm244, 1, 0
    %v293 = vsel %vm245, 1, 0
    %v294 = vsel %vm246, 1, 0
    %v295 = vsel %vm247, 1, 0
    %v296 = vsel %vm248, 1, 0
    %v297 = vsel %vm249, 1, 0
    %v298 = vsel %vm250, 1, 0
    %v299 = vsel %vm251, 1, 0
    %v300 = vsel %vm252, 1, 0
    %v301 = vsel %vm253, 1, 0
    %v302 = vsel %vm254, 1, 0
    %v303 = vsel %vm255, 1, 0
    %v304 = vsel %vm256, 1, 0
    %v305 = vsel %vm257, 1, 0
    %v306 = vsel %vm258, 1, 0
    %v307 = vsel %vm259, 1, 0
    %v308 = vsel %vm260, 1, 0
    %v309 = vsel %vm261, 1, 0
    %v310 = vsel %vm262, 1, 0
    %v311 = vsel %vm263, 1, 0
    %v312 = vsel %vm264, 1, 0
    %v313 = vsel %vm265, 1, 0
    %v314 = vsel %vm266, 1, 0
    %v315 = vsel %vm267, 1, 0
    %v316 = vsel %vm268, 1, 0
    %v317 = vsel %vm269, 1, 0
    %v318 = vsel %vm270, 1, 0
    %v319 = vsel %vm271, 1, 0
    %v320 = vsel %vm272, 1, 0
    %v321 = vsel %vm273, 1, 0
    %v322 = vsel %vm274, 1, 0
    %v323 = vsel %vm275, 1, 0
    %v324 = vsel %vm276, 1, 0
    %v325 = vsel %vm277, 1, 0
    %v326 = vsel %vm278, 1, 0
    %v327 = vsel %vm279, 1, 0
    %v328 = vsel %vm280, 1, 0
    %v329 = vsel %vm281, 1, 0
    %v330 = vsel %vm282, 1, 0
    %v331 = vsel %vm283, 1, 0
    %v332 = vsel %vm284, 1, 0
    %v333 = vcvt.s32.f32 %v285
    %v334 = vcvt.s32.f32 %v286
    %v335 = vcvt.s32.f32 %v287
    %v336 = vcvt.s32.f32 %v288
    %v337 = vcvt.s32.f32 %v289
    %v338 = vcvt.s32.f32 %v290
    %v339 = vcvt.s32.f32 %v291
    %v340 = vcvt.s32.f32 %v292
    %v341 = vcvt.s32.f32 %v293
    %v342 = vcvt.s32.f32 %v294
    %v343 = vcvt.s32.f32 %v295
    %v344 = vcvt.s32.f32 %v296
    %v345 = vcvt.s32.f32 %v297
    %v346 = vcvt.s32.f32 %v298
    %v347 = vcvt.s32.f32 %v299
    %v348 = vcvt.s32.f32 %v300
    %v349 = vcvt.s32.f32 %v301
    %v350 = vcvt.s32.f32 %v302
    %v351 = vcvt.s32.f32 %v303
    %v352 = vcvt.s32.f32 %v304
    %v353 = vcvt.s32.f32 %v305
    %v354 = vcvt.s32.f32 %v306
    %v355 = vcvt.s32.f32 %v307
    %v356 = vcvt.s32.f32 %v308
    %v357 = vcvt.s32.f32 %v309
    %v358 = vcvt.s32.f32 %v310
    %v359 = vcvt.s32.f32 %v311
    %v360 = vcvt.s32.f32 %v312
    %v361 = vcvt.s32.f32 %v313
    %v362 = vcvt.s32.f32 %v314
    %v363 = vcvt.s32.f32 %v315
    %v364 = vcvt.s32.f32 %v316
    %v365 = vcvt.s32.f32 %v317
    %v366 = vcvt.s32.f32 %v318
    %v367 = vcvt.s32.f32 %v319
    %v368 = vcvt.s32.f32 %v320
    %v369 = vcvt.s32.f32 %v321
    %v370 = vcvt.s32.f32 %v322
    %v371 = vcvt.s32.f32 %v323
    %v372 = vcvt.s32.f32 %v324
    %v373 = vcvt.s32.f32 %v325
    %v374 = vcvt.s32.f32 %v326
    %v375 = vcvt.s32.f32 %v327
    %v376 = vcvt.s32.f32 %v328
    %v377 = vcvt.s32.f32 %v329
    %v378 = vcvt.s32.f32 %v330
    %v379 = vcvt.s32.f32 %v331
    %v380 = vcvt.s32.f32 %v332
    %v381 = vand.u32 %v348, 4294901760
    %382 = vmatpush.msra.mxu0 %v381
    %v383 = vand.u32 %v347, 4294901760
    %384 = vmatpush.msra.mxu0 %v383
    %v385 = vand.u32 %v346, 4294901760
    %386 = vmatpush.msra.mxu0 %v385
    %v387 = vand.u32 %v345, 4294901760
    %388 = vmatpush.msra.mxu0 %v387
    %v389 = vand.u32 %v344, 4294901760
    %390 = vmatpush.msra.mxu0 %v389
    %v391 = vand.u32 %v343, 4294901760
    %392 = vmatpush.msra.mxu0 %v391
    %v393 = vand.u32 %v342, 4294901760
    %394 = vmatpush.msra.mxu0 %v393
    %v395 = vand.u32 %v341, 4294901760
    %396 = vmatpush.msra.mxu0 %v395
    %v397 = vand.u32 %v340, 4294901760
    %398 = vmatpush.msra.mxu0 %v397
    %v399 = vand.u32 %v339, 4294901760
    %400 = vmatpush.msra.mxu0 %v399
    %v401 = vand.u32 %v338, 4294901760
    %402 = vmatpush.msra.mxu0 %v401
    %v403 = vand.u32 %v337, 4294901760
    %404 = vmatpush.msra.mxu0 %v403
    %v405 = vand.u32 %v336, 4294901760
    %406 = vmatpush.msra.mxu0 %v405
    %v407 = vand.u32 %v335, 4294901760
    %408 = vmatpush.msra.mxu0 %v407
    %v409 = vand.u32 %v334, 4294901760
    %410 = vmatpush.msra.mxu0 %v409
    %v411 = vand.u32 %v333, 4294901760
    %412 = vmatpush.msra.mxu0 %v411
    %v413 = vand.u32 %v82, 4294901760
    %v414 = vsub.f32 %v82, %v413
    %v415 = vand.u32 %v414, 4294901760
    %v416 = vsub.f32 %v414, %v415
    %v417 = vand.u32 %v416, 4294901760
    %418 = vmatmul.f32.gmra.mxu0 %v417
    %v419 = vpop.f32.mrf.mxu0
    %v420 = vadd.f32 0.0, %v419
    %v421 = vand.u32 %v85, 4294901760
    %v422 = vsub.f32 %v85, %v421
    %v423 = vand.u32 %v422, 4294901760
    %v424 = vsub.f32 %v422, %v423
    %v425 = vand.u32 %v424, 4294901760
    %426 = vmatmul.f32.gmra.mxu0 %v425
    %v427 = vpop.f32.mrf.mxu0
    %v428 = vadd.f32 0.0, %v427
    %429 = vdwg.mxu0
    %v430 = vand.u32 %v348, 4294901760
    %v431 = vsub.f32 %v348, %v430
    %v432 = vand.u32 %v431, 4294901760
    %v433 = vsub.f32 %v431, %v432
    %v434 = vand.u32 %v433, 4294901760
    %435 = vmatpush.msra.mxu0 %v434
    %v436 = vand.u32 %v347, 4294901760
    %v437 = vsub.f32 %v347, %v436
    %v438 = vand.u32 %v437, 4294901760
    %v439 = vsub.f32 %v437, %v438
    %v440 = vand.u32 %v439, 4294901760
    %441 = vmatpush.msra.mxu0 %v440
    %v442 = vand.u32 %v346, 4294901760
    %v443 = vsub.f32 %v346, %v442
    %v444 = vand.u32 %v443, 4294901760
    %v445 = vsub.f32 %v443, %v444
    %v446 = vand.u32 %v445, 4294901760
    %447 = vmatpush.msra.mxu0 %v446
    %v448 = vand.u32 %v345, 4294901760
    %v449 = vsub.f32 %v345, %v448
    %v450 = vand.u32 %v449, 4294901760
    %v451 = vsub.f32 %v449, %v450
    %v452 = vand.u32 %v451, 4294901760
    %453 = vmatpush.msra.mxu0 %v452
    %v454 = vand.u32 %v344, 4294901760
    %v455 = vsub.f32 %v344, %v454
    %v456 = vand.u32 %v455, 4294901760
    %v457 = vsub.f32 %v455, %v456
    %v458 = vand.u32 %v457, 4294901760
    %459 = vmatpush.msra.mxu0 %v458
    %v460 = vand.u32 %v343, 4294901760
    %v461 = vsub.f32 %v343, %v460
    %v462 = vand.u32 %v461, 4294901760
    %v463 = vsub.f32 %v461, %v462
    %v464 = vand.u32 %v463, 4294901760
    %465 = vmatpush.msra.mxu0 %v464
    %v466 = vand.u32 %v342, 4294901760
    %v467 = vsub.f32 %v342, %v466
    %v468 = vand.u32 %v467, 4294901760
    %v469 = vsub.f32 %v467, %v468
    %v470 = vand.u32 %v469, 4294901760
    %471 = vmatpush.msra.mxu0 %v470
    %v472 = vand.u32 %v341, 4294901760
    %v473 = vsub.f32 %v341, %v472
    %v474 = vand.u32 %v473, 4294901760
    %v475 = vsub.f32 %v473, %v474
    %v476 = vand.u32 %v475, 4294901760
    %477 = vmatpush.msra.mxu0 %v476
    %v478 = vand.u32 %v340, 4294901760
    %v479 = vsub.f32 %v340, %v478
    %v480 = vand.u32 %v479, 4294901760
    %v481 = vsub.f32 %v479, %v480
    %v482 = vand.u32 %v481, 4294901760
    %483 = vmatpush.msra.mxu0 %v482
    %v484 = vand.u32 %v339, 4294901760
    %v485 = vsub.f32 %v339, %v484
    %v486 = vand.u32 %v485, 4294901760
    %v487 = vsub.f32 %v485, %v486
    %v488 = vand.u32 %v487, 4294901760
    %489 = vmatpush.msra.mxu0 %v488
    %v490 = vand.u32 %v338, 4294901760
    %v491 = vsub.f32 %v338, %v490
    %v492 = vand.u32 %v491, 4294901760
    %v493 = vsub.f32 %v491, %v492
    %v494 = vand.u32 %v493, 4294901760
    %495 = vmatpush.msra.mxu0 %v494
    %v496 = vand.u32 %v337, 4294901760
    %v497 = vsub.f32 %v337, %v496
    %v498 = vand.u32 %v497, 4294901760
    %v499 = vsub.f32 %v497, %v498
    %v500 = vand.u32 %v499, 4294901760
    %501 = vmatpush.msra.mxu0 %v500
    %v502 = vand.u32 %v336, 4294901760
    %v503 = vsub.f32 %v336, %v502
    %v504 = vand.u32 %v503, 4294901760
    %v505 = vsub.f32 %v503, %v504
    %v506 = vand.u32 %v505, 4294901760
    %507 = vmatpush.msra.mxu0 %v506
    %v508 = vand.u32 %v335, 4294901760
    %v509 = vsub.f32 %v335, %v508
    %v510 = vand.u32 %v509, 4294901760
    %v511 = vsub.f32 %v509, %v510
    %v512 = vand.u32 %v511, 4294901760
    %513 = vmatpush.msra.mxu0 %v512
    %v514 = vand.u32 %v334, 4294901760
    %v515 = vsub.f32 %v334, %v514
    %v516 = vand.u32 %v515, 4294901760
    %v517 = vsub.f32 %v515, %v516
    %v518 = vand.u32 %v517, 4294901760
    %519 = vmatpush.msra.mxu0 %v518
    %v520 = vand.u32 %v333, 4294901760
    %v521 = vsub.f32 %v333, %v520
    %v522 = vand.u32 %v521, 4294901760
    %v523 = vsub.f32 %v521, %v522
    %v524 = vand.u32 %v523, 4294901760
    %525 = vmatpush.msra.mxu0 %v524
    %v526 = vand.u32 %v82, 4294901760
    %527 = vmatmul.f32.gmra.mxu0 %v526
    %v528 = vpop.f32.mrf.mxu0
    %v529 = vadd.f32 %v420, %v528
    %v530 = vand.u32 %v85, 4294901760
    %531 = vmatmul.f32.gmra.mxu0 %v530
    %v532 = vpop.f32.mrf.mxu0
    %v533 = vadd.f32 %v428, %v532
    %534 = vdwg.mxu0
    %v535 = vand.u32 %v348, 4294901760
    %v536 = vsub.f32 %v348, %v535
    %537 = vmatpush.msra.mxu0 %v536
    %v538 = vand.u32 %v347, 4294901760
    %v539 = vsub.f32 %v347, %v538
    %540 = vmatpush.msra.mxu0 %v539
    %v541 = vand.u32 %v346, 4294901760
    %v542 = vsub.f32 %v346, %v541
    %543 = vmatpush.msra.mxu0 %v542
    %v544 = vand.u32 %v345, 4294901760
    %v545 = vsub.f32 %v345, %v544
    %546 = vmatpush.msra.mxu0 %v545
    %v547 = vand.u32 %v344, 4294901760
    %v548 = vsub.f32 %v344, %v547
    %549 = vmatpush.msra.mxu0 %v548
    %v550 = vand.u32 %v343, 4294901760
    %v551 = vsub.f32 %v343, %v550
    %552 = vmatpush.msra.mxu0 %v551
    %v553 = vand.u32 %v342, 4294901760
    %v554 = vsub.f32 %v342, %v553
    %555 = vmatpush.msra.mxu0 %v554
    %v556 = vand.u32 %v341, 4294901760
    %v557 = vsub.f32 %v341, %v556
    %558 = vmatpush.msra.mxu0 %v557
    %v559 = vand.u32 %v340, 4294901760
    %v560 = vsub.f32 %v340, %v559
    %561 = vmatpush.msra.mxu0 %v560
    %v562 = vand.u32 %v339, 4294901760
    %v563 = vsub.f32 %v339, %v562
    %564 = vmatpush.msra.mxu0 %v563
    %v565 = vand.u32 %v338, 4294901760
    %v566 = vsub.f32 %v338, %v565
    %567 = vmatpush.msra.mxu0 %v566
    %v568 = vand.u32 %v337, 4294901760
    %v569 = vsub.f32 %v337, %v568
    %570 = vmatpush.msra.mxu0 %v569
    %v571 = vand.u32 %v336, 4294901760
    %v572 = vsub.f32 %v336, %v571
    %573 = vmatpush.msra.mxu0 %v572
    %v574 = vand.u32 %v335, 4294901760
    %v575 = vsub.f32 %v335, %v574
    %576 = vmatpush.msra.mxu0 %v575
    %v577 = vand.u32 %v334, 4294901760
    %v578 = vsub.f32 %v334, %v577
    %579 = vmatpush.msra.mxu0 %v578
    %v580 = vand.u32 %v333, 4294901760
    %v581 = vsub.f32 %v333, %v580
    %582 = vmatpush.msra.mxu0 %v581
    %v583 = vand.u32 %v82, 4294901760
    %v584 = vsub.f32 %v82, %v583
    %585 = vmatmul.f32.gmra.mxu0 %v584
    %v586 = vpop.f32.mrf.mxu0
    %v587 = vadd.f32 %v529, %v586
    %v588 = vand.u32 %v85, 4294901760
    %v589 = vsub.f32 %v85, %v588
    %590 = vmatmul.f32.gmra.mxu0 %v589
    %v591 = vpop.f32.mrf.mxu0
    %v592 = vadd.f32 %v533, %v591
    %593 = vdwg.mxu0
    %v594 = vand.u32 %v348, 4294901760
    %595 = vmatpush.msra.mxu0 %v594
    %v596 = vand.u32 %v347, 4294901760
    %597 = vmatpush.msra.mxu0 %v596
    %v598 = vand.u32 %v346, 4294901760
    %599 = vmatpush.msra.mxu0 %v598
    %v600 = vand.u32 %v345, 4294901760
    %601 = vmatpush.msra.mxu0 %v600
    %v602 = vand.u32 %v344, 4294901760
    %603 = vmatpush.msra.mxu0 %v602
    %v604 = vand.u32 %v343, 4294901760
    %605 = vmatpush.msra.mxu0 %v604
    %v606 = vand.u32 %v342, 4294901760
    %607 = vmatpush.msra.mxu0 %v606
    %v608 = vand.u32 %v341, 4294901760
    %609 = vmatpush.msra.mxu0 %v608
    %v610 = vand.u32 %v340, 4294901760
    %611 = vmatpush.msra.mxu0 %v610
    %v612 = vand.u32 %v339, 4294901760
    %613 = vmatpush.msra.mxu0 %v612
    %v614 = vand.u32 %v338, 4294901760
    %615 = vmatpush.msra.mxu0 %v614
    %v616 = vand.u32 %v337, 4294901760
    %617 = vmatpush.msra.mxu0 %v616
    %v618 = vand.u32 %v336, 4294901760
    %619 = vmatpush.msra.mxu0 %v618
    %v620 = vand.u32 %v335, 4294901760
    %621 = vmatpush.msra.mxu0 %v620
    %v622 = vand.u32 %v334, 4294901760
    %623 = vmatpush.msra.mxu0 %v622
    %v624 = vand.u32 %v333, 4294901760
    %625 = vmatpush.msra.mxu0 %v624
    %v626 = vand.u32 %v82, 4294901760
    %v627 = vsub.f32 %v82, %v626
    %v628 = vand.u32 %v627, 4294901760
    %629 = vmatmul.f32.gmra.mxu0 %v628
    %v630 = vpop.f32.mrf.mxu0
    %v631 = vadd.f32 %v587, %v630
    %v632 = vand.u32 %v85, 4294901760
    %v633 = vsub.f32 %v85, %v632
    %v634 = vand.u32 %v633, 4294901760
    %635 = vmatmul.f32.gmra.mxu0 %v634
    %v636 = vpop.f32.mrf.mxu0
    %v637 = vadd.f32 %v592, %v636
    %638 = vdwg.mxu0
    %v639 = vand.u32 %v348, 4294901760
    %v640 = vsub.f32 %v348, %v639
    %v641 = vand.u32 %v640, 4294901760
    %642 = vmatpush.msra.mxu0 %v641
    %v643 = vand.u32 %v347, 4294901760
    %v644 = vsub.f32 %v347, %v643
    %v645 = vand.u32 %v644, 4294901760
    %646 = vmatpush.msra.mxu0 %v645
    %v647 = vand.u32 %v346, 4294901760
    %v648 = vsub.f32 %v346, %v647
    %v649 = vand.u32 %v648, 4294901760
    %650 = vmatpush.msra.mxu0 %v649
    %v651 = vand.u32 %v345, 4294901760
    %v652 = vsub.f32 %v345, %v651
    %v653 = vand.u32 %v652, 4294901760
    %654 = vmatpush.msra.mxu0 %v653
    %v655 = vand.u32 %v344, 4294901760
    %v656 = vsub.f32 %v344, %v655
    %v657 = vand.u32 %v656, 4294901760
    %658 = vmatpush.msra.mxu0 %v657
    %v659 = vand.u32 %v343, 4294901760
    %v660 = vsub.f32 %v343, %v659
    %v661 = vand.u32 %v660, 4294901760
    %662 = vmatpush.msra.mxu0 %v661
    %v663 = vand.u32 %v342, 4294901760
    %v664 = vsub.f32 %v342, %v663
    %v665 = vand.u32 %v664, 4294901760
    %666 = vmatpush.msra.mxu0 %v665
    %v667 = vand.u32 %v341, 4294901760
    %v668 = vsub.f32 %v341, %v667
    %v669 = vand.u32 %v668, 4294901760
    %670 = vmatpush.msra.mxu0 %v669
    %v671 = vand.u32 %v340, 4294901760
    %v672 = vsub.f32 %v340, %v671
    %v673 = vand.u32 %v672, 4294901760
    %674 = vmatpush.msra.mxu0 %v673
    %v675 = vand.u32 %v339, 4294901760
    %v676 = vsub.f32 %v339, %v675
    %v677 = vand.u32 %v676, 4294901760
    %678 = vmatpush.msra.mxu0 %v677
    %v679 = vand.u32 %v338, 4294901760
    %v680 = vsub.f32 %v338, %v679
    %v681 = vand.u32 %v680, 4294901760
    %682 = vmatpush.msra.mxu0 %v681
    %v683 = vand.u32 %v337, 4294901760
    %v684 = vsub.f32 %v337, %v683
    %v685 = vand.u32 %v684, 4294901760
    %686 = vmatpush.msra.mxu0 %v685
    %v687 = vand.u32 %v336, 4294901760
    %v688 = vsub.f32 %v336, %v687
    %v689 = vand.u32 %v688, 4294901760
    %690 = vmatpush.msra.mxu0 %v689
    %v691 = vand.u32 %v335, 4294901760
    %v692 = vsub.f32 %v335, %v691
    %v693 = vand.u32 %v692, 4294901760
    %694 = vmatpush.msra.mxu0 %v693
    %v695 = vand.u32 %v334, 4294901760
    %v696 = vsub.f32 %v334, %v695
    %v697 = vand.u32 %v696, 4294901760
    %698 = vmatpush.msra.mxu0 %v697
    %v699 = vand.u32 %v333, 4294901760
    %v700 = vsub.f32 %v333, %v699
    %v701 = vand.u32 %v700, 4294901760
    %702 = vmatpush.msra.mxu0 %v701
    %v703 = vand.u32 %v82, 4294901760
    %704 = vmatmul.f32.gmra.mxu0 %v703
    %v705 = vpop.f32.mrf.mxu0
    %v706 = vadd.f32 %v631, %v705
    %v707 = vand.u32 %v85, 4294901760
    %708 = vmatmul.f32.gmra.mxu0 %v707
    %v709 = vpop.f32.mrf.mxu0
    %v710 = vadd.f32 %v637, %v709
    %711 = vdwg.mxu0
    %v712 = vand.u32 %v348, 4294901760
    %713 = vmatpush.msra.mxu0 %v712
    %v714 = vand.u32 %v347, 4294901760
    %715 = vmatpush.msra.mxu0 %v714
    %v716 = vand.u32 %v346, 4294901760
    %717 = vmatpush.msra.mxu0 %v716
    %v718 = vand.u32 %v345, 4294901760
    %719 = vmatpush.msra.mxu0 %v718
    %v720 = vand.u32 %v344, 4294901760
    %721 = vmatpush.msra.mxu0 %v720
    %v722 = vand.u32 %v343, 4294901760
    %723 = vmatpush.msra.mxu0 %v722
    %v724 = vand.u32 %v342, 4294901760
    %725 = vmatpush.msra.mxu0 %v724
    %v726 = vand.u32 %v341, 4294901760
    %727 = vmatpush.msra.mxu0 %v726
    %v728 = vand.u32 %v340, 4294901760
    %729 = vmatpush.msra.mxu0 %v728
    %v730 = vand.u32 %v339, 4294901760
    %731 = vmatpush.msra.mxu0 %v730
    %v732 = vand.u32 %v338, 4294901760
    %733 = vmatpush.msra.mxu0 %v732
    %v734 = vand.u32 %v337, 4294901760
    %735 = vmatpush.msra.mxu0 %v734
    %v736 = vand.u32 %v336, 4294901760
    %737 = vmatpush.msra.mxu0 %v736
    %v738 = vand.u32 %v335, 4294901760
    %739 = vmatpush.msra.mxu0 %v738
    %v740 = vand.u32 %v334, 4294901760
    %741 = vmatpush.msra.mxu0 %v740
    %v742 = vand.u32 %v333, 4294901760
    %743 = vmatpush.msra.mxu0 %v742
    %v744 = vand.u32 %v82, 4294901760
    %745 = vmatmul.f32.gmra.mxu0 %v744
    %v746 = vpop.f32.mrf.mxu0
    %v747 = vadd.f32 %v706, %v746
    %v748 = vand.u32 %v85, 4294901760
    %749 = vmatmul.f32.gmra.mxu0 %v748
    %v750 = vpop.f32.mrf.mxu0
    %v751 = vadd.f32 %v710, %v750
    %752 = vdwg.mxu0
    %v753 = vand.u32 %v364, 4294901760
    %754 = vmatpush.msra.mxu0 %v753
    %v755 = vand.u32 %v363, 4294901760
    %756 = vmatpush.msra.mxu0 %v755
    %v757 = vand.u32 %v362, 4294901760
    %758 = vmatpush.msra.mxu0 %v757
    %v759 = vand.u32 %v361, 4294901760
    %760 = vmatpush.msra.mxu0 %v759
    %v761 = vand.u32 %v360, 4294901760
    %762 = vmatpush.msra.mxu0 %v761
    %v763 = vand.u32 %v359, 4294901760
    %764 = vmatpush.msra.mxu0 %v763
    %v765 = vand.u32 %v358, 4294901760
    %766 = vmatpush.msra.mxu0 %v765
    %v767 = vand.u32 %v357, 4294901760
    %768 = vmatpush.msra.mxu0 %v767
    %v769 = vand.u32 %v356, 4294901760
    %770 = vmatpush.msra.mxu0 %v769
    %v771 = vand.u32 %v355, 4294901760
    %772 = vmatpush.msra.mxu0 %v771
    %v773 = vand.u32 %v354, 4294901760
    %774 = vmatpush.msra.mxu0 %v773
    %v775 = vand.u32 %v353, 4294901760
    %776 = vmatpush.msra.mxu0 %v775
    %v777 = vand.u32 %v352, 4294901760
    %778 = vmatpush.msra.mxu0 %v777
    %v779 = vand.u32 %v351, 4294901760
    %780 = vmatpush.msra.mxu0 %v779
    %v781 = vand.u32 %v350, 4294901760
    %782 = vmatpush.msra.mxu0 %v781
    %v783 = vand.u32 %v349, 4294901760
    %784 = vmatpush.msra.mxu0 %v783
    %v785 = vand.u32 %v83, 4294901760
    %v786 = vsub.f32 %v83, %v785
    %v787 = vand.u32 %v786, 4294901760
    %v788 = vsub.f32 %v786, %v787
    %v789 = vand.u32 %v788, 4294901760
    %790 = vmatmul.f32.gmra.mxu0 %v789
    %v791 = vpop.f32.mrf.mxu0
    %v792 = vadd.f32 %v747, %v791
    %v793 = vand.u32 %v86, 4294901760
    %v794 = vsub.f32 %v86, %v793
    %v795 = vand.u32 %v794, 4294901760
    %v796 = vsub.f32 %v794, %v795
    %v797 = vand.u32 %v796, 4294901760
    %798 = vmatmul.f32.gmra.mxu0 %v797
    %v799 = vpop.f32.mrf.mxu0
    %v800 = vadd.f32 %v751, %v799
    %801 = vdwg.mxu0
    %v802 = vand.u32 %v364, 4294901760
    %v803 = vsub.f32 %v364, %v802
    %v804 = vand.u32 %v803, 4294901760
    %v805 = vsub.f32 %v803, %v804
    %v806 = vand.u32 %v805, 4294901760
    %807 = vmatpush.msra.mxu0 %v806
    %v808 = vand.u32 %v363, 4294901760
    %v809 = vsub.f32 %v363, %v808
    %v810 = vand.u32 %v809, 4294901760
    %v811 = vsub.f32 %v809, %v810
    %v812 = vand.u32 %v811, 4294901760
    %813 = vmatpush.msra.mxu0 %v812
    %v814 = vand.u32 %v362, 4294901760
    %v815 = vsub.f32 %v362, %v814
    %v816 = vand.u32 %v815, 4294901760
    %v817 = vsub.f32 %v815, %v816
    %v818 = vand.u32 %v817, 4294901760
    %819 = vmatpush.msra.mxu0 %v818
    %v820 = vand.u32 %v361, 4294901760
    %v821 = vsub.f32 %v361, %v820
    %v822 = vand.u32 %v821, 4294901760
    %v823 = vsub.f32 %v821, %v822
    %v824 = vand.u32 %v823, 4294901760
    %825 = vmatpush.msra.mxu0 %v824
    %v826 = vand.u32 %v360, 4294901760
    %v827 = vsub.f32 %v360, %v826
    %v828 = vand.u32 %v827, 4294901760
    %v829 = vsub.f32 %v827, %v828
    %v830 = vand.u32 %v829, 4294901760
    %831 = vmatpush.msra.mxu0 %v830
    %v832 = vand.u32 %v359, 4294901760
    %v833 = vsub.f32 %v359, %v832
    %v834 = vand.u32 %v833, 4294901760
    %v835 = vsub.f32 %v833, %v834
    %v836 = vand.u32 %v835, 4294901760
    %837 = vmatpush.msra.mxu0 %v836
    %v838 = vand.u32 %v358, 4294901760
    %v839 = vsub.f32 %v358, %v838
    %v840 = vand.u32 %v839, 4294901760
    %v841 = vsub.f32 %v839, %v840
    %v842 = vand.u32 %v841, 4294901760
    %843 = vmatpush.msra.mxu0 %v842
    %v844 = vand.u32 %v357, 4294901760
    %v845 = vsub.f32 %v357, %v844
    %v846 = vand.u32 %v845, 4294901760
    %v847 = vsub.f32 %v845, %v846
    %v848 = vand.u32 %v847, 4294901760
    %849 = vmatpush.msra.mxu0 %v848
    %v850 = vand.u32 %v356, 4294901760
    %v851 = vsub.f32 %v356, %v850
    %v852 = vand.u32 %v851, 4294901760
    %v853 = vsub.f32 %v851, %v852
    %v854 = vand.u32 %v853, 4294901760
    %855 = vmatpush.msra.mxu0 %v854
    %v856 = vand.u32 %v355, 4294901760
    %v857 = vsub.f32 %v355, %v856
    %v858 = vand.u32 %v857, 4294901760
    %v859 = vsub.f32 %v857, %v858
    %v860 = vand.u32 %v859, 4294901760
    %861 = vmatpush.msra.mxu0 %v860
    %v862 = vand.u32 %v354, 4294901760
    %v863 = vsub.f32 %v354, %v862
    %v864 = vand.u32 %v863, 4294901760
    %v865 = vsub.f32 %v863, %v864
    %v866 = vand.u32 %v865, 4294901760
    %867 = vmatpush.msra.mxu0 %v866
    %v868 = vand.u32 %v353, 4294901760
    %v869 = vsub.f32 %v353, %v868
    %v870 = vand.u32 %v869, 4294901760
    %v871 = vsub.f32 %v869, %v870
    %v872 = vand.u32 %v871, 4294901760
    %873 = vmatpush.msra.mxu0 %v872
    %v874 = vand.u32 %v352, 4294901760
    %v875 = vsub.f32 %v352, %v874
    %v876 = vand.u32 %v875, 4294901760
    %v877 = vsub.f32 %v875, %v876
    %v878 = vand.u32 %v877, 4294901760
    %879 = vmatpush.msra.mxu0 %v878
    %v880 = vand.u32 %v351, 4294901760
    %v881 = vsub.f32 %v351, %v880
    %v882 = vand.u32 %v881, 4294901760
    %v883 = vsub.f32 %v881, %v882
    %v884 = vand.u32 %v883, 4294901760
    %885 = vmatpush.msra.mxu0 %v884
    %v886 = vand.u32 %v350, 4294901760
    %v887 = vsub.f32 %v350, %v886
    %v888 = vand.u32 %v887, 4294901760
    %v889 = vsub.f32 %v887, %v888
    %v890 = vand.u32 %v889, 4294901760
    %891 = vmatpush.msra.mxu0 %v890
    %v892 = vand.u32 %v349, 4294901760
    %v893 = vsub.f32 %v349, %v892
    %v894 = vand.u32 %v893, 4294901760
    %v895 = vsub.f32 %v893, %v894
    %v896 = vand.u32 %v895, 4294901760
    %897 = vmatpush.msra.mxu0 %v896
    %v898 = vand.u32 %v83, 4294901760
    %899 = vmatmul.f32.gmra.mxu0 %v898
    %v900 = vpop.f32.mrf.mxu0
    %v901 = vadd.f32 %v792, %v900
    %v902 = vand.u32 %v86, 4294901760
    %903 = vmatmul.f32.gmra.mxu0 %v902
    %v904 = vpop.f32.mrf.mxu0
    %v905 = vadd.f32 %v800, %v904
    %906 = vdwg.mxu0
    %v907 = vand.u32 %v364, 4294901760
    %v908 = vsub.f32 %v364, %v907
    %909 = vmatpush.msra.mxu0 %v908
    %v910 = vand.u32 %v363, 4294901760
    %v911 = vsub.f32 %v363, %v910
    %912 = vmatpush.msra.mxu0 %v911
    %v913 = vand.u32 %v362, 4294901760
    %v914 = vsub.f32 %v362, %v913
    %915 = vmatpush.msra.mxu0 %v914
    %v916 = vand.u32 %v361, 4294901760
    %v917 = vsub.f32 %v361, %v916
    %918 = vmatpush.msra.mxu0 %v917
    %v919 = vand.u32 %v360, 4294901760
    %v920 = vsub.f32 %v360, %v919
    %921 = vmatpush.msra.mxu0 %v920
    %v922 = vand.u32 %v359, 4294901760
    %v923 = vsub.f32 %v359, %v922
    %924 = vmatpush.msra.mxu0 %v923
    %v925 = vand.u32 %v358, 4294901760
    %v926 = vsub.f32 %v358, %v925
    %927 = vmatpush.msra.mxu0 %v926
    %v928 = vand.u32 %v357, 4294901760
    %v929 = vsub.f32 %v357, %v928
    %930 = vmatpush.msra.mxu0 %v929
    %v931 = vand.u32 %v356, 4294901760
    %v932 = vsub.f32 %v356, %v931
    %933 = vmatpush.msra.mxu0 %v932
    %v934 = vand.u32 %v355, 4294901760
    %v935 = vsub.f32 %v355, %v934
    %936 = vmatpush.msra.mxu0 %v935
    %v937 = vand.u32 %v354, 4294901760
    %v938 = vsub.f32 %v354, %v937
    %939 = vmatpush.msra.mxu0 %v938
    %v940 = vand.u32 %v353, 4294901760
    %v941 = vsub.f32 %v353, %v940
    %942 = vmatpush.msra.mxu0 %v941
    %v943 = vand.u32 %v352, 4294901760
    %v944 = vsub.f32 %v352, %v943
    %945 = vmatpush.msra.mxu0 %v944
    %v946 = vand.u32 %v351, 4294901760
    %v947 = vsub.f32 %v351, %v946
    %948 = vmatpush.msra.mxu0 %v947
    %v949 = vand.u32 %v350, 4294901760
    %v950 = vsub.f32 %v350, %v949
    %951 = vmatpush.msra.mxu0 %v950
    %v952 = vand.u32 %v349, 4294901760
    %v953 = vsub.f32 %v349, %v952
    %954 = vmatpush.msra.mxu0 %v953
    %v955 = vand.u32 %v83, 4294901760
    %v956 = vsub.f32 %v83, %v955
    %957 = vmatmul.f32.gmra.mxu0 %v956
    %v958 = vpop.f32.mrf.mxu0
    %v959 = vadd.f32 %v901, %v958
    %v960 = vand.u32 %v86, 4294901760
    %v961 = vsub.f32 %v86, %v960
    %962 = vmatmul.f32.gmra.mxu0 %v961
    %v963 = vpop.f32.mrf.mxu0
    %v964 = vadd.f32 %v905, %v963
    %965 = vdwg.mxu0
    %v966 = vand.u32 %v364, 4294901760
    %967 = vmatpush.msra.mxu0 %v966
    %v968 = vand.u32 %v363, 4294901760
    %969 = vmatpush.msra.mxu0 %v968
    %v970 = vand.u32 %v362, 4294901760
    %971 = vmatpush.msra.mxu0 %v970
    %v972 = vand.u32 %v361, 4294901760
    %973 = vmatpush.msra.mxu0 %v972
    %v974 = vand.u32 %v360, 4294901760
    %975 = vmatpush.msra.mxu0 %v974
    %v976 = vand.u32 %v359, 4294901760
    %977 = vmatpush.msra.mxu0 %v976
    %v978 = vand.u32 %v358, 4294901760
    %979 = vmatpush.msra.mxu0 %v978
    %v980 = vand.u32 %v357, 4294901760
    %981 = vmatpush.msra.mxu0 %v980
    %v982 = vand.u32 %v356, 4294901760
    %983 = vmatpush.msra.mxu0 %v982
    %v984 = vand.u32 %v355, 4294901760
    %985 = vmatpush.msra.mxu0 %v984
    %v986 = vand.u32 %v354, 4294901760
    %987 = vmatpush.msra.mxu0 %v986
    %v988 = vand.u32 %v353, 4294901760
    %989 = vmatpush.msra.mxu0 %v988
    %v990 = vand.u32 %v352, 4294901760
    %991 = vmatpush.msra.mxu0 %v990
    %v992 = vand.u32 %v351, 4294901760
    %993 = vmatpush.msra.mxu0 %v992
    %v994 = vand.u32 %v350, 4294901760
    %995 = vmatpush.msra.mxu0 %v994
    %v996 = vand.u32 %v349, 4294901760
    %997 = vmatpush.msra.mxu0 %v996
    %v998 = vand.u32 %v83, 4294901760
    %v999 = vsub.f32 %v83, %v998
    %v1000 = vand.u32 %v999, 4294901760
    %1001 = vmatmul.f32.gmra.mxu0 %v1000
    %v1002 = vpop.f32.mrf.mxu0
    %v1003 = vadd.f32 %v959, %v1002
    %v1004 = vand.u32 %v86, 4294901760
    %v1005 = vsub.f32 %v86, %v1004
    %v1006 = vand.u32 %v1005, 4294901760
    %1007 = vmatmul.f32.gmra.mxu0 %v1006
    %v1008 = vpop.f32.mrf.mxu0
    %v1009 = vadd.f32 %v964, %v1008
    %1010 = vdwg.mxu0
    %v1011 = vand.u32 %v364, 4294901760
    %v1012 = vsub.f32 %v364, %v1011
    %v1013 = vand.u32 %v1012, 4294901760
    %1014 = vmatpush.msra.mxu0 %v1013
    %v1015 = vand.u32 %v363, 4294901760
    %v1016 = vsub.f32 %v363, %v1015
    %v1017 = vand.u32 %v1016, 4294901760
    %1018 = vmatpush.msra.mxu0 %v1017
    %v1019 = vand.u32 %v362, 4294901760
    %v1020 = vsub.f32 %v362, %v1019
    %v1021 = vand.u32 %v1020, 4294901760
    %1022 = vmatpush.msra.mxu0 %v1021
    %v1023 = vand.u32 %v361, 4294901760
    %v1024 = vsub.f32 %v361, %v1023
    %v1025 = vand.u32 %v1024, 4294901760
    %1026 = vmatpush.msra.mxu0 %v1025
    %v1027 = vand.u32 %v360, 4294901760
    %v1028 = vsub.f32 %v360, %v1027
    %v1029 = vand.u32 %v1028, 4294901760
    %1030 = vmatpush.msra.mxu0 %v1029
    %v1031 = vand.u32 %v359, 4294901760
    %v1032 = vsub.f32 %v359, %v1031
    %v1033 = vand.u32 %v1032, 4294901760
    %1034 = vmatpush.msra.mxu0 %v1033
    %v1035 = vand.u32 %v358, 4294901760
    %v1036 = vsub.f32 %v358, %v1035
    %v1037 = vand.u32 %v1036, 4294901760
    %1038 = vmatpush.msra.mxu0 %v1037
    %v1039 = vand.u32 %v357, 4294901760
    %v1040 = vsub.f32 %v357, %v1039
    %v1041 = vand.u32 %v1040, 4294901760
    %1042 = vmatpush.msra.mxu0 %v1041
    %v1043 = vand.u32 %v356, 4294901760
    %v1044 = vsub.f32 %v356, %v1043
    %v1045 = vand.u32 %v1044, 4294901760
    %1046 = vmatpush.msra.mxu0 %v1045
    %v1047 = vand.u32 %v355, 4294901760
    %v1048 = vsub.f32 %v355, %v1047
    %v1049 = vand.u32 %v1048, 4294901760
    %1050 = vmatpush.msra.mxu0 %v1049
    %v1051 = vand.u32 %v354, 4294901760
    %v1052 = vsub.f32 %v354, %v1051
    %v1053 = vand.u32 %v1052, 4294901760
    %1054 = vmatpush.msra.mxu0 %v1053
    %v1055 = vand.u32 %v353, 4294901760
    %v1056 = vsub.f32 %v353, %v1055
    %v1057 = vand.u32 %v1056, 4294901760
    %1058 = vmatpush.msra.mxu0 %v1057
    %v1059 = vand.u32 %v352, 4294901760
    %v1060 = vsub.f32 %v352, %v1059
    %v1061 = vand.u32 %v1060, 4294901760
    %1062 = vmatpush.msra.mxu0 %v1061
    %v1063 = vand.u32 %v351, 4294901760
    %v1064 = vsub.f32 %v351, %v1063
    %v1065 = vand.u32 %v1064, 4294901760
    %1066 = vmatpush.msra.mxu0 %v1065
    %v1067 = vand.u32 %v350, 4294901760
    %v1068 = vsub.f32 %v350, %v1067
    %v1069 = vand.u32 %v1068, 4294901760
    %1070 = vmatpush.msra.mxu0 %v1069
    %v1071 = vand.u32 %v349, 4294901760
    %v1072 = vsub.f32 %v349, %v1071
    %v1073 = vand.u32 %v1072, 4294901760
    %1074 = vmatpush.msra.mxu0 %v1073
    %v1075 = vand.u32 %v83, 4294901760
    %1076 = vmatmul.f32.gmra.mxu0 %v1075
    %v1077 = vpop.f32.mrf.mxu0
    %v1078 = vadd.f32 %v1003, %v1077
    %v1079 = vand.u32 %v86, 4294901760
    %1080 = vmatmul.f32.gmra.mxu0 %v1079
    %v1081 = vpop.f32.mrf.mxu0
    %v1082 = vadd.f32 %v1009, %v1081
    %1083 = vdwg.mxu0
    %v1084 = vand.u32 %v364, 4294901760
    %1085 = vmatpush.msra.mxu0 %v1084
    %v1086 = vand.u32 %v363, 4294901760
    %1087 = vmatpush.msra.mxu0 %v1086
    %v1088 = vand.u32 %v362, 4294901760
    %1089 = vmatpush.msra.mxu0 %v1088
    %v1090 = vand.u32 %v361, 4294901760
    %1091 = vmatpush.msra.mxu0 %v1090
    %v1092 = vand.u32 %v360, 4294901760
    %1093 = vmatpush.msra.mxu0 %v1092
    %v1094 = vand.u32 %v359, 4294901760
    %1095 = vmatpush.msra.mxu0 %v1094
    %v1096 = vand.u32 %v358, 4294901760
    %1097 = vmatpush.msra.mxu0 %v1096
    %v1098 = vand.u32 %v357, 4294901760
    %1099 = vmatpush.msra.mxu0 %v1098
    %v1100 = vand.u32 %v356, 4294901760
    %1101 = vmatpush.msra.mxu0 %v1100
    %v1102 = vand.u32 %v355, 4294901760
    %1103 = vmatpush.msra.mxu0 %v1102
    %v1104 = vand.u32 %v354, 4294901760
    %1105 = vmatpush.msra.mxu0 %v1104
    %v1106 = vand.u32 %v353, 4294901760
    %1107 = vmatpush.msra.mxu0 %v1106
    %v1108 = vand.u32 %v352, 4294901760
    %1109 = vmatpush.msra.mxu0 %v1108
    %v1110 = vand.u32 %v351, 4294901760
    %1111 = vmatpush.msra.mxu0 %v1110
    %v1112 = vand.u32 %v350, 4294901760
    %1113 = vmatpush.msra.mxu0 %v1112
    %v1114 = vand.u32 %v349, 4294901760
    %1115 = vmatpush.msra.mxu0 %v1114
    %v1116 = vand.u32 %v83, 4294901760
    %1117 = vmatmul.f32.gmra.mxu0 %v1116
    %v1118 = vpop.f32.mrf.mxu0
    %v1119 = vadd.f32 %v1078, %v1118
    %v1120 = vand.u32 %v86, 4294901760
    %1121 = vmatmul.f32.gmra.mxu0 %v1120
    %v1122 = vpop.f32.mrf.mxu0
    %v1123 = vadd.f32 %v1082, %v1122
    %1124 = vdwg.mxu0
    %v1125 = vand.u32 %v380, 4294901760
    %1126 = vmatpush.msra.mxu0 %v1125
    %v1127 = vand.u32 %v379, 4294901760
    %1128 = vmatpush.msra.mxu0 %v1127
    %v1129 = vand.u32 %v378, 4294901760
    %1130 = vmatpush.msra.mxu0 %v1129
    %v1131 = vand.u32 %v377, 4294901760
    %1132 = vmatpush.msra.mxu0 %v1131
    %v1133 = vand.u32 %v376, 4294901760
    %1134 = vmatpush.msra.mxu0 %v1133
    %v1135 = vand.u32 %v375, 4294901760
    %1136 = vmatpush.msra.mxu0 %v1135
    %v1137 = vand.u32 %v374, 4294901760
    %1138 = vmatpush.msra.mxu0 %v1137
    %v1139 = vand.u32 %v373, 4294901760
    %1140 = vmatpush.msra.mxu0 %v1139
    %v1141 = vand.u32 %v372, 4294901760
    %1142 = vmatpush.msra.mxu0 %v1141
    %v1143 = vand.u32 %v371, 4294901760
    %1144 = vmatpush.msra.mxu0 %v1143
    %v1145 = vand.u32 %v370, 4294901760
    %1146 = vmatpush.msra.mxu0 %v1145
    %v1147 = vand.u32 %v369, 4294901760
    %1148 = vmatpush.msra.mxu0 %v1147
    %v1149 = vand.u32 %v368, 4294901760
    %1150 = vmatpush.msra.mxu0 %v1149
    %v1151 = vand.u32 %v367, 4294901760
    %1152 = vmatpush.msra.mxu0 %v1151
    %v1153 = vand.u32 %v366, 4294901760
    %1154 = vmatpush.msra.mxu0 %v1153
    %v1155 = vand.u32 %v365, 4294901760
    %1156 = vmatpush.msra.mxu0 %v1155
    %v1157 = vand.u32 %v84, 4294901760
    %v1158 = vsub.f32 %v84, %v1157
    %v1159 = vand.u32 %v1158, 4294901760
    %v1160 = vsub.f32 %v1158, %v1159
    %v1161 = vand.u32 %v1160, 4294901760
    %1162 = vmatmul.f32.gmra.mxu0 %v1161
    %v1163 = vpop.f32.mrf.mxu0
    %v1164 = vadd.f32 %v1119, %v1163
    %v1165 = vand.u32 %v87, 4294901760
    %v1166 = vsub.f32 %v87, %v1165
    %v1167 = vand.u32 %v1166, 4294901760
    %v1168 = vsub.f32 %v1166, %v1167
    %v1169 = vand.u32 %v1168, 4294901760
    %1170 = vmatmul.f32.gmra.mxu0 %v1169
    %v1171 = vpop.f32.mrf.mxu0
    %v1172 = vadd.f32 %v1123, %v1171
    %1173 = vdwg.mxu0
    %v1174 = vand.u32 %v380, 4294901760
    %v1175 = vsub.f32 %v380, %v1174
    %v1176 = vand.u32 %v1175, 4294901760
    %v1177 = vsub.f32 %v1175, %v1176
    %v1178 = vand.u32 %v1177, 4294901760
    %1179 = vmatpush.msra.mxu0 %v1178
    %v1180 = vand.u32 %v379, 4294901760
    %v1181 = vsub.f32 %v379, %v1180
    %v1182 = vand.u32 %v1181, 4294901760
    %v1183 = vsub.f32 %v1181, %v1182
    %v1184 = vand.u32 %v1183, 4294901760
    %1185 = vmatpush.msra.mxu0 %v1184
    %v1186 = vand.u32 %v378, 4294901760
    %v1187 = vsub.f32 %v378, %v1186
    %v1188 = vand.u32 %v1187, 4294901760
    %v1189 = vsub.f32 %v1187, %v1188
    %v1190 = vand.u32 %v1189, 4294901760
    %1191 = vmatpush.msra.mxu0 %v1190
    %v1192 = vand.u32 %v377, 4294901760
    %v1193 = vsub.f32 %v377, %v1192
    %v1194 = vand.u32 %v1193, 4294901760
    %v1195 = vsub.f32 %v1193, %v1194
    %v1196 = vand.u32 %v1195, 4294901760
    %1197 = vmatpush.msra.mxu0 %v1196
    %v1198 = vand.u32 %v376, 4294901760
    %v1199 = vsub.f32 %v376, %v1198
    %v1200 = vand.u32 %v1199, 4294901760
    %v1201 = vsub.f32 %v1199, %v1200
    %v1202 = vand.u32 %v1201, 4294901760
    %1203 = vmatpush.msra.mxu0 %v1202
    %v1204 = vand.u32 %v375, 4294901760
    %v1205 = vsub.f32 %v375, %v1204
    %v1206 = vand.u32 %v1205, 4294901760
    %v1207 = vsub.f32 %v1205, %v1206
    %v1208 = vand.u32 %v1207, 4294901760
    %1209 = vmatpush.msra.mxu0 %v1208
    %v1210 = vand.u32 %v374, 4294901760
    %v1211 = vsub.f32 %v374, %v1210
    %v1212 = vand.u32 %v1211, 4294901760
    %v1213 = vsub.f32 %v1211, %v1212
    %v1214 = vand.u32 %v1213, 4294901760
    %1215 = vmatpush.msra.mxu0 %v1214
    %v1216 = vand.u32 %v373, 4294901760
    %v1217 = vsub.f32 %v373, %v1216
    %v1218 = vand.u32 %v1217, 4294901760
    %v1219 = vsub.f32 %v1217, %v1218
    %v1220 = vand.u32 %v1219, 4294901760
    %1221 = vmatpush.msra.mxu0 %v1220
    %v1222 = vand.u32 %v372, 4294901760
    %v1223 = vsub.f32 %v372, %v1222
    %v1224 = vand.u32 %v1223, 4294901760
    %v1225 = vsub.f32 %v1223, %v1224
    %v1226 = vand.u32 %v1225, 4294901760
    %1227 = vmatpush.msra.mxu0 %v1226
    %v1228 = vand.u32 %v371, 4294901760
    %v1229 = vsub.f32 %v371, %v1228
    %v1230 = vand.u32 %v1229, 4294901760
    %v1231 = vsub.f32 %v1229, %v1230
    %v1232 = vand.u32 %v1231, 4294901760
    %1233 = vmatpush.msra.mxu0 %v1232
    %v1234 = vand.u32 %v370, 4294901760
    %v1235 = vsub.f32 %v370, %v1234
    %v1236 = vand.u32 %v1235, 4294901760
    %v1237 = vsub.f32 %v1235, %v1236
    %v1238 = vand.u32 %v1237, 4294901760
    %1239 = vmatpush.msra.mxu0 %v1238
    %v1240 = vand.u32 %v369, 4294901760
    %v1241 = vsub.f32 %v369, %v1240
    %v1242 = vand.u32 %v1241, 4294901760
    %v1243 = vsub.f32 %v1241, %v1242
    %v1244 = vand.u32 %v1243, 4294901760
    %1245 = vmatpush.msra.mxu0 %v1244
    %v1246 = vand.u32 %v368, 4294901760
    %v1247 = vsub.f32 %v368, %v1246
    %v1248 = vand.u32 %v1247, 4294901760
    %v1249 = vsub.f32 %v1247, %v1248
    %v1250 = vand.u32 %v1249, 4294901760
    %1251 = vmatpush.msra.mxu0 %v1250
    %v1252 = vand.u32 %v367, 4294901760
    %v1253 = vsub.f32 %v367, %v1252
    %v1254 = vand.u32 %v1253, 4294901760
    %v1255 = vsub.f32 %v1253, %v1254
    %v1256 = vand.u32 %v1255, 4294901760
    %1257 = vmatpush.msra.mxu0 %v1256
    %v1258 = vand.u32 %v366, 4294901760
    %v1259 = vsub.f32 %v366, %v1258
    %v1260 = vand.u32 %v1259, 4294901760
    %v1261 = vsub.f32 %v1259, %v1260
    %v1262 = vand.u32 %v1261, 4294901760
    %1263 = vmatpush.msra.mxu0 %v1262
    %v1264 = vand.u32 %v365, 4294901760
    %v1265 = vsub.f32 %v365, %v1264
    %v1266 = vand.u32 %v1265, 4294901760
    %v1267 = vsub.f32 %v1265, %v1266
    %v1268 = vand.u32 %v1267, 4294901760
    %1269 = vmatpush.msra.mxu0 %v1268
    %v1270 = vand.u32 %v84, 4294901760
    %1271 = vmatmul.f32.gmra.mxu0 %v1270
    %v1272 = vpop.f32.mrf.mxu0
    %v1273 = vadd.f32 %v1164, %v1272
    %v1274 = vand.u32 %v87, 4294901760
    %1275 = vmatmul.f32.gmra.mxu0 %v1274
    %v1276 = vpop.f32.mrf.mxu0
    %v1277 = vadd.f32 %v1172, %v1276
    %1278 = vdwg.mxu0
    %v1279 = vand.u32 %v380, 4294901760
    %v1280 = vsub.f32 %v380, %v1279
    %1281 = vmatpush.msra.mxu0 %v1280
    %v1282 = vand.u32 %v379, 4294901760
    %v1283 = vsub.f32 %v379, %v1282
    %1284 = vmatpush.msra.mxu0 %v1283
    %v1285 = vand.u32 %v378, 4294901760
    %v1286 = vsub.f32 %v378, %v1285
    %1287 = vmatpush.msra.mxu0 %v1286
    %v1288 = vand.u32 %v377, 4294901760
    %v1289 = vsub.f32 %v377, %v1288
    %1290 = vmatpush.msra.mxu0 %v1289
    %v1291 = vand.u32 %v376, 4294901760
    %v1292 = vsub.f32 %v376, %v1291
    %1293 = vmatpush.msra.mxu0 %v1292
    %v1294 = vand.u32 %v375, 4294901760
    %v1295 = vsub.f32 %v375, %v1294
    %1296 = vmatpush.msra.mxu0 %v1295
    %v1297 = vand.u32 %v374, 4294901760
    %v1298 = vsub.f32 %v374, %v1297
    %1299 = vmatpush.msra.mxu0 %v1298
    %v1300 = vand.u32 %v373, 4294901760
    %v1301 = vsub.f32 %v373, %v1300
    %1302 = vmatpush.msra.mxu0 %v1301
    %v1303 = vand.u32 %v372, 4294901760
    %v1304 = vsub.f32 %v372, %v1303
    %1305 = vmatpush.msra.mxu0 %v1304
    %v1306 = vand.u32 %v371, 4294901760
    %v1307 = vsub.f32 %v371, %v1306
    %1308 = vmatpush.msra.mxu0 %v1307
    %v1309 = vand.u32 %v370, 4294901760
    %v1310 = vsub.f32 %v370, %v1309
    %1311 = vmatpush.msra.mxu0 %v1310
    %v1312 = vand.u32 %v369, 4294901760
    %v1313 = vsub.f32 %v369, %v1312
    %1314 = vmatpush.msra.mxu0 %v1313
    %v1315 = vand.u32 %v368, 4294901760
    %v1316 = vsub.f32 %v368, %v1315
    %1317 = vmatpush.msra.mxu0 %v1316
    %v1318 = vand.u32 %v367, 4294901760
    %v1319 = vsub.f32 %v367, %v1318
    %1320 = vmatpush.msra.mxu0 %v1319
    %v1321 = vand.u32 %v366, 4294901760
    %v1322 = vsub.f32 %v366, %v1321
    %1323 = vmatpush.msra.mxu0 %v1322
    %v1324 = vand.u32 %v365, 4294901760
    %v1325 = vsub.f32 %v365, %v1324
    %1326 = vmatpush.msra.mxu0 %v1325
    %v1327 = vand.u32 %v84, 4294901760
    %v1328 = vsub.f32 %v84, %v1327
    %1329 = vmatmul.f32.gmra.mxu0 %v1328
    %v1330 = vpop.f32.mrf.mxu0
    %v1331 = vadd.f32 %v1273, %v1330
    %v1332 = vand.u32 %v87, 4294901760
    %v1333 = vsub.f32 %v87, %v1332
    %1334 = vmatmul.f32.gmra.mxu0 %v1333
    %v1335 = vpop.f32.mrf.mxu0
    %v1336 = vadd.f32 %v1277, %v1335
    %1337 = vdwg.mxu0
    %v1338 = vand.u32 %v380, 4294901760
    %1339 = vmatpush.msra.mxu0 %v1338
    %v1340 = vand.u32 %v379, 4294901760
    %1341 = vmatpush.msra.mxu0 %v1340
    %v1342 = vand.u32 %v378, 4294901760
    %1343 = vmatpush.msra.mxu0 %v1342
    %v1344 = vand.u32 %v377, 4294901760
    %1345 = vmatpush.msra.mxu0 %v1344
    %v1346 = vand.u32 %v376, 4294901760
    %1347 = vmatpush.msra.mxu0 %v1346
    %v1348 = vand.u32 %v375, 4294901760
    %1349 = vmatpush.msra.mxu0 %v1348
    %v1350 = vand.u32 %v374, 4294901760
    %1351 = vmatpush.msra.mxu0 %v1350
    %v1352 = vand.u32 %v373, 4294901760
    %1353 = vmatpush.msra.mxu0 %v1352
    %v1354 = vand.u32 %v372, 4294901760
    %1355 = vmatpush.msra.mxu0 %v1354
    %v1356 = vand.u32 %v371, 4294901760
    %1357 = vmatpush.msra.mxu0 %v1356
    %v1358 = vand.u32 %v370, 4294901760
    %1359 = vmatpush.msra.mxu0 %v1358
    %v1360 = vand.u32 %v369, 4294901760
    %1361 = vmatpush.msra.mxu0 %v1360
    %v1362 = vand.u32 %v368, 4294901760
    %1363 = vmatpush.msra.mxu0 %v1362
    %v1364 = vand.u32 %v367, 4294901760
    %1365 = vmatpush.msra.mxu0 %v1364
    %v1366 = vand.u32 %v366, 4294901760
    %1367 = vmatpush.msra.mxu0 %v1366
    %v1368 = vand.u32 %v365, 4294901760
    %1369 = vmatpush.msra.mxu0 %v1368
    %v1370 = vand.u32 %v84, 4294901760
    %v1371 = vsub.f32 %v84, %v1370
    %v1372 = vand.u32 %v1371, 4294901760
    %1373 = vmatmul.f32.gmra.mxu0 %v1372
    %v1374 = vpop.f32.mrf.mxu0
    %v1375 = vadd.f32 %v1331, %v1374
    %v1376 = vand.u32 %v87, 4294901760
    %v1377 = vsub.f32 %v87, %v1376
    %v1378 = vand.u32 %v1377, 4294901760
    %1379 = vmatmul.f32.gmra.mxu0 %v1378
    %v1380 = vpop.f32.mrf.mxu0
    %v1381 = vadd.f32 %v1336, %v1380
    %1382 = vdwg.mxu0
    %v1383 = vand.u32 %v380, 4294901760
    %v1384 = vsub.f32 %v380, %v1383
    %v1385 = vand.u32 %v1384, 4294901760
    %1386 = vmatpush.msra.mxu0 %v1385
    %v1387 = vand.u32 %v379, 4294901760
    %v1388 = vsub.f32 %v379, %v1387
    %v1389 = vand.u32 %v1388, 4294901760
    %1390 = vmatpush.msra.mxu0 %v1389
    %v1391 = vand.u32 %v378, 4294901760
    %v1392 = vsub.f32 %v378, %v1391
    %v1393 = vand.u32 %v1392, 4294901760
    %1394 = vmatpush.msra.mxu0 %v1393
    %v1395 = vand.u32 %v377, 4294901760
    %v1396 = vsub.f32 %v377, %v1395
    %v1397 = vand.u32 %v1396, 4294901760
    %1398 = vmatpush.msra.mxu0 %v1397
    %v1399 = vand.u32 %v376, 4294901760
    %v1400 = vsub.f32 %v376, %v1399
    %v1401 = vand.u32 %v1400, 4294901760
    %1402 = vmatpush.msra.mxu0 %v1401
    %v1403 = vand.u32 %v375, 4294901760
    %v1404 = vsub.f32 %v375, %v1403
    %v1405 = vand.u32 %v1404, 4294901760
    %1406 = vmatpush.msra.mxu0 %v1405
    %v1407 = vand.u32 %v374, 4294901760
    %v1408 = vsub.f32 %v374, %v1407
    %v1409 = vand.u32 %v1408, 4294901760
    %1410 = vmatpush.msra.mxu0 %v1409
    %v1411 = vand.u32 %v373, 4294901760
    %v1412 = vsub.f32 %v373, %v1411
    %v1413 = vand.u32 %v1412, 4294901760
    %1414 = vmatpush.msra.mxu0 %v1413
    %v1415 = vand.u32 %v372, 4294901760
    %v1416 = vsub.f32 %v372, %v1415
    %v1417 = vand.u32 %v1416, 4294901760
    %1418 = vmatpush.msra.mxu0 %v1417
    %v1419 = vand.u32 %v371, 4294901760
    %v1420 = vsub.f32 %v371, %v1419
    %v1421 = vand.u32 %v1420, 4294901760
    %1422 = vmatpush.msra.mxu0 %v1421
    %v1423 = vand.u32 %v370, 4294901760
    %v1424 = vsub.f32 %v370, %v1423
    %v1425 = vand.u32 %v1424, 4294901760
    %1426 = vmatpush.msra.mxu0 %v1425
    %v1427 = vand.u32 %v369, 4294901760
    %v1428 = vsub.f32 %v369, %v1427
    %v1429 = vand.u32 %v1428, 4294901760
    %1430 = vmatpush.msra.mxu0 %v1429
    %v1431 = vand.u32 %v368, 4294901760
    %v1432 = vsub.f32 %v368, %v1431
    %v1433 = vand.u32 %v1432, 4294901760
    %1434 = vmatpush.msra.mxu0 %v1433
    %v1435 = vand.u32 %v367, 4294901760
    %v1436 = vsub.f32 %v367, %v1435
    %v1437 = vand.u32 %v1436, 4294901760
    %1438 = vmatpush.msra.mxu0 %v1437
    %v1439 = vand.u32 %v366, 4294901760
    %v1440 = vsub.f32 %v366, %v1439
    %v1441 = vand.u32 %v1440, 4294901760
    %1442 = vmatpush.msra.mxu0 %v1441
    %v1443 = vand.u32 %v365, 4294901760
    %v1444 = vsub.f32 %v365, %v1443
    %v1445 = vand.u32 %v1444, 4294901760
    %1446 = vmatpush.msra.mxu0 %v1445
    %v1447 = vand.u32 %v84, 4294901760
    %1448 = vmatmul.f32.gmra.mxu0 %v1447
    %v1449 = vpop.f32.mrf.mxu0
    %v1450 = vadd.f32 %v1375, %v1449
    %v1451 = vand.u32 %v87, 4294901760
    %1452 = vmatmul.f32.gmra.mxu0 %v1451
    %v1453 = vpop.f32.mrf.mxu0
    %v1454 = vadd.f32 %v1381, %v1453
    %1455 = vdwg.mxu0
    %v1456 = vand.u32 %v380, 4294901760
    %1457 = vmatpush.msra.mxu0 %v1456
    %v1458 = vand.u32 %v379, 4294901760
    %1459 = vmatpush.msra.mxu0 %v1458
    %v1460 = vand.u32 %v378, 4294901760
    %1461 = vmatpush.msra.mxu0 %v1460
    %v1462 = vand.u32 %v377, 4294901760
    %1463 = vmatpush.msra.mxu0 %v1462
    %v1464 = vand.u32 %v376, 4294901760
    %1465 = vmatpush.msra.mxu0 %v1464
    %v1466 = vand.u32 %v375, 4294901760
    %1467 = vmatpush.msra.mxu0 %v1466
    %v1468 = vand.u32 %v374, 4294901760
    %1469 = vmatpush.msra.mxu0 %v1468
    %v1470 = vand.u32 %v373, 4294901760
    %1471 = vmatpush.msra.mxu0 %v1470
    %v1472 = vand.u32 %v372, 4294901760
    %1473 = vmatpush.msra.mxu0 %v1472
    %v1474 = vand.u32 %v371, 4294901760
    %1475 = vmatpush.msra.mxu0 %v1474
    %v1476 = vand.u32 %v370, 4294901760
    %1477 = vmatpush.msra.mxu0 %v1476
    %v1478 = vand.u32 %v369, 4294901760
    %1479 = vmatpush.msra.mxu0 %v1478
    %v1480 = vand.u32 %v368, 4294901760
    %1481 = vmatpush.msra.mxu0 %v1480
    %v1482 = vand.u32 %v367, 4294901760
    %1483 = vmatpush.msra.mxu0 %v1482
    %v1484 = vand.u32 %v366, 4294901760
    %1485 = vmatpush.msra.mxu0 %v1484
    %v1486 = vand.u32 %v365, 4294901760
    %1487 = vmatpush.msra.mxu0 %v1486
    %v1488 = vand.u32 %v84, 4294901760
    %1489 = vmatmul.f32.gmra.mxu0 %v1488
    %v1490 = vpop.f32.mrf.mxu0
    %v1491 = vadd.f32 %v1450, %v1490
    %v1492 = vand.u32 %v87, 4294901760
    %1493 = vmatmul.f32.gmra.mxu0 %v1492
    %v1494 = vpop.f32.mrf.mxu0
    %v1495 = vadd.f32 %v1454, %v1494
    %1496 = vdwg.mxu0
    %v1497 = vmul.f32 %v1491, %v74
    %v1498 = vmul.f32 %v1495, %v75
    %v1499 = vadd.f32 %v1497, %v1498
    %1500 = vadd.xlane.f32.xlu0 %v1499
    %v1501 = vpop.xlane.xlu0 %1500
    %v1502 = vrot.slane %v1501, 4
    %v1503 = vadd.f32 %v1501, %v1502
    %v1504 = vrot.slane %v1503, 2
    %v1505 = vadd.f32 %v1503, %v1504
    %v1506 = vrot.slane %v1505, 1
    %v1507 = vadd.f32 %v1505, %v1506
    %s1508 = vtos %v1507
    %v1509 = vstv %s1508
    %1510 = vst [vmem:[#allocation8] sm:$0x1] %v1509
    // Predicated region
    $region26: #{tpu_custom_call.1} parent=1 // pred_check
      _
    $region27: #{tpu_custom_call.1} parent=1 // pred_check_branch
      %1512 = sbr.rel (0) target = $region29
    $region28: #{tpu_custom_call.1} parent=1 // pred_region
      %1514 = vsyncadd [#allocation4], 0
      %s1516 = sshll.u32 [#allocation8], 4
      %s1517 = int_to_ptr.vmem [resolvable:$true] %s1516
      %s1518 = sshll.u32 %s3, 4
      %s1519 = int_to_ptr.hbm [resolvable:$true] %s1518
      %1521 = dma.vmem_to_hbm [thread:$0]  %s1517, 16, %s1519, [#allocation4]
    $region29: #{tpu_custom_call.1} parent=1 // pred_fallthru
      _
    // Predicated region
    $region30: #{tpu_custom_call.1} parent=1 // pred_check
      _
    $region31: #{tpu_custom_call.1} parent=1 // pred_check_branch
      %1523 = sbr.rel (0) target = $region33
    $region32: #{tpu_custom_call.1} parent=1 // pred_region
      %1525 = dma.done [#allocation4], 16
    $region33: #{tpu_custom_call.1} parent=1 // pred_fallthru
      _
    %1526 = vsyncpa [#allocation3], 1
    %1527 = vsyncpa [#allocation6], 1
    %1528 = vsyncpa [#allocation4], 1

</llo_original>
